<compile_context>
chip_gen: v5e
topology: v5e:2x2
jax: 0.10.0
libtpu: 0.0.40
codegen_flags: <defaults>
</compile_context>

<pallas_src>
import jax
import jax.numpy as jnp
import numpy as np
from jax.experimental import pallas as pl
from jax.experimental.pallas import tpu as pltpu


# ------------------------------ fused kernel -------------------------------

def _ggad_fused_kernel(
    # inputs
    seq_ref, adj_ref,
    w1_ref, b1_ref, a1_ref,
    w2_ref, b2_ref, a2_ref,
    w4_ref, wf1_ref, wf2_ref, wf3_ref,
    abn_col_ref, abn_row_ref, norm_col_ref, noise_ref,
    # outputs
    emb_ref, comb_ref, f3_ref, con_ref, abn_out_ref,
):
    f32 = jnp.float32
    bf16 = jnp.bfloat16

    N = adj_ref.shape[0]
    A = abn_col_ref.shape[0]
    Mn = norm_col_ref.shape[0]
    M = Mn + A

    adj = adj_ref[...]
    adj_b = adj.astype(bf16)

    # ---- GCN-1: PReLU(adj @ (seq @ W1) + b1)  (bf16 MXU, f32 acc/epilogue) --
    fts1 = jnp.dot(seq_ref[...].astype(bf16), w1_ref[...].astype(bf16),
                   preferred_element_type=f32)
    h1 = jnp.dot(adj_b, fts1.astype(bf16), preferred_element_type=f32)
    h1 = h1 + b1_ref[...]
    h1 = jnp.where(h1 > 0, h1, a1_ref[...] * h1)          # PReLU, learnable alpha

    # ---- GCN-2 --------------------------------------------------------------
    fts2 = jnp.dot(h1.astype(bf16), w2_ref[...].astype(bf16),
                   preferred_element_type=f32)
    emb = jnp.dot(adj_b, fts2.astype(bf16), preferred_element_type=f32)
    emb = emb + b2_ref[...]
    emb = jnp.where(emb > 0, emb, a2_ref[...] * emb)

    # ---- in-kernel one-hot row selectors (gathers/scatter never leave VMEM) -
    col_a = jax.lax.broadcasted_iota(jnp.int32, (A, N), 1)
    sel_abn = jnp.where(col_a == abn_col_ref[...], 1.0, 0.0)      # (A, N)
    col_n = jax.lax.broadcasted_iota(jnp.int32, (Mn, N), 1)
    sel_norm = jnp.where(col_n == norm_col_ref[...], 1.0, 0.0)    # (Mn, N)
    row_na = jax.lax.broadcasted_iota(jnp.int32, (N, A), 0)
    sel_abn_t = jnp.where(row_na == abn_row_ref[...], 1.0, 0.0)   # (N, A)

    # emb_abnormal = emb[abn_idx] + noise  (f32 one-hot gather)
    abn_out_ref[...] = (jnp.dot(sel_abn, emb, preferred_element_type=f32)
                        + noise_ref[...])

    # neigh_adj = adj[abn_idx];  emb_con = ReLU((neigh_adj @ emb) @ W4)
    neigh_adj = jnp.dot(sel_abn, adj, preferred_element_type=f32)     # (A, N)
    emb_con = jnp.dot(neigh_adj.astype(bf16), emb.astype(bf16),
                      preferred_element_type=f32)                     # (A, H)
    emb_con = jnp.dot(emb_con.astype(bf16), w4_ref[...].astype(bf16),
                      preferred_element_type=f32)
    emb_con = jnp.maximum(emb_con, 0.0)
    con_ref[...] = emb_con

    # emb_combine = concat(emb[normal_idx], emb_con)  (assembled in VMEM)
    emb_norm = jnp.dot(sel_norm, emb, preferred_element_type=f32)     # (Mn, H)
    comb_ref[0:Mn, :] = emb_norm
    comb_ref[Mn:M, :] = emb_con
    comb = comb_ref[...]

    # MLP head fc1->ReLU->fc2->ReLU->fc3 ; (M,16)/(M,8) intermediates stay in vregs
    f1 = jnp.maximum(jnp.dot(comb.astype(bf16), wf1_ref[...].astype(bf16),
                             preferred_element_type=f32), 0.0)
    f2 = jnp.maximum(jnp.dot(f1.astype(bf16), wf2_ref[...].astype(bf16),
                             preferred_element_type=f32), 0.0)
    f3_ref[...] = jnp.dot(f2.astype(bf16), wf3_ref[...].astype(bf16),
                          preferred_element_type=f32)

    # emb[abn_idx] = emb_con  (one-hot scatter, no HBM round-trip / copy)
    scat = jnp.dot(sel_abn_t, emb_con, preferred_element_type=f32)    # (N, H)
    mask = jnp.sum(sel_abn_t, axis=1, keepdims=True)                  # (N, 1) in {0,1}
    emb_ref[...] = emb * (1.0 - mask) + scat


# ------------------------------ wrapper call --------------------------------

def ggad_forward(params, seq1, adj, sample_abnormal_idx, normal_idx, noise):
    """train_flag=True, sparse=False, adj_csr=None path of Model.forward."""
    N, Fin = seq1.shape
    H = params["w_gcn1"].shape[1]
    A = int(sample_abnormal_idx.shape[0])
    Mn = int(normal_idx.shape[0])
    M = Mn + A

    abn_col = sample_abnormal_idx.reshape(A, 1).astype(jnp.int32)
    abn_row = sample_abnormal_idx.reshape(1, A).astype(jnp.int32)
    norm_col = normal_idx.reshape(Mn, 1).astype(jnp.int32)
    noise2d = noise.reshape(A, H).astype(jnp.float32)

    flops = 2 * (
        N * Fin * H + N * N * H            # gcn1
        + N * H * H + N * N * H            # gcn2
        + A * N * H                        # abnormal gather
        + A * N * N                        # neigh_adj gather
        + A * N * H + A * H * H            # emb_con + fc4
        + Mn * N * H                       # normal gather
        + M * H * (H // 2) + M * (H // 2) * (H // 4) + M * (H // 4)   # fc1..fc3
        + N * A * H                        # scatter
    )
    in_arrays = (seq1, adj,
                 params["w_gcn1"], params["b_gcn1"], params["alpha1"],
                 params["w_gcn2"], params["b_gcn2"], params["alpha2"],
                 params["w_fc4"], params["w_fc1"], params["w_fc2"], params["w_fc3"],
                 abn_col, abn_row, norm_col, noise2d)
    out_elems = N * H + M * H + M + A * H + A * H
    bytes_accessed = 4 * (sum(int(x.size) for x in in_arrays) + out_elems)

    def full2d(shape):
        return pl.BlockSpec(shape, lambda i: (0, 0))

    in_specs = [
        full2d((N, Fin)), full2d((N, N)),
        full2d((Fin, H)), full2d((1, H)), full2d((1, 1)),
        full2d((H, H)), full2d((1, H)), full2d((1, 1)),
        full2d((H, H)), full2d((H, H // 2)), full2d((H // 2, H // 4)),
        full2d((H // 4, 1)),
        full2d((A, 1)), full2d((1, A)), full2d((Mn, 1)),
        full2d((A, H)),
    ]
    out_specs = (
        full2d((N, H)), full2d((M, H)), full2d((M, 1)),
        full2d((A, H)), full2d((A, H)),
    )
    out_shape = (
        jax.ShapeDtypeStruct((N, H), jnp.float32),
        jax.ShapeDtypeStruct((M, H), jnp.float32),
        jax.ShapeDtypeStruct((M, 1), jnp.float32),
        jax.ShapeDtypeStruct((A, H), jnp.float32),
        jax.ShapeDtypeStruct((A, H), jnp.float32),
    )

    # TODO(synk): for large N (adj no longer VMEM-resident, e.g. N >= 2048 on
    # v7x's 64 MiB VMEM) this single-block kernel must be tiled over a
    # (row_tile, k_tile) grid with an f32 accumulator scratch and the row axis
    # marked "parallel" to use both v7x TensorCores.
    emb2d, comb2d, f3_2d, emb_con, emb_abn = pl.pallas_call(
        _ggad_fused_kernel,
        out_shape=out_shape,
        grid=(1,),
        in_specs=in_specs,
        out_specs=out_specs,
        compiler_params=pltpu.CompilerParams(
            dimension_semantics=("arbitrary",)),
        cost_estimate=pl.CostEstimate(
            flops=flops, transcendentals=0, bytes_accessed=bytes_accessed),
    )(*in_arrays)

    return emb2d[None], comb2d[None], f3_2d[None], emb_con, emb_abn[None]


# ------------------------------ parameter init ------------------------------

def xavier_uniform(key, fan_in, fan_out):
    a = (6.0 / (fan_in + fan_out)) ** 0.5
    return jax.random.uniform(key, (fan_in, fan_out), jnp.float32, -a, a)


def init_params(key, n_in, n_h):
    ks = jax.random.split(key, 8)
    return {
        # GCN linears (xavier, no bias inside fc; GCN bias filled with 0)
        "w_gcn1": xavier_uniform(ks[0], n_in, n_h),
        "b_gcn1": jnp.zeros((1, n_h), jnp.float32),
        "alpha1": jnp.full((1, 1), 0.25, jnp.float32),   # PReLU learnable alpha
        "w_gcn2": xavier_uniform(ks[1], n_h, n_h),
        "b_gcn2": jnp.zeros((1, n_h), jnp.float32),
        "alpha2": jnp.full((1, 1), 0.25, jnp.float32),
        # top-level Linear layers (stored transposed: (in, out))
        "w_fc1": xavier_uniform(ks[2], n_h, n_h // 2),
        "w_fc2": xavier_uniform(ks[3], n_h // 2, n_h // 4),
        "w_fc3": xavier_uniform(ks[4], n_h // 4, 1),
        "w_fc4": xavier_uniform(ks[5], n_h, n_h),
    }
    # NOTE: gcn3, fc5, fc6, Discriminator, readouts are unused in forward().


# ---------------------------------- main -----------------------------------

if __name__ == "__main__":
    n_in, n_h = 32, 32
    N = 64                      # number of graph nodes
    A = 8                       # number of sampled abnormal nodes
    NORMAL = 16                 # number of normal nodes used
    var, mean = 0.1, 0.0        # args.var, args.mean

    key = jax.random.PRNGKey(0)
    k_par, k_x, k_adj, k_noise = jax.random.split(key, 4)

    params = init_params(k_par, n_in, n_h)

    seq1 = jax.random.normal(k_x, (N, n_in), jnp.float32)
    adj = jax.random.uniform(k_adj, (N, N), jnp.float32)
    adj = adj / jnp.sum(adj, axis=1, keepdims=True)      # row-normalized dense adj

    sample_abnormal_idx = jnp.arange(0, A, dtype=jnp.int32)
    normal_idx = jnp.arange(A, A + NORMAL, dtype=jnp.int32)
    noise = jax.random.normal(k_noise, (1, A, n_h), jnp.float32) * var + mean

    fwd = jax.jit(ggad_forward)
    outs = fwd(params, seq1, adj, sample_abnormal_idx, normal_idx, noise)
    outs = jax.block_until_ready(outs)

    emb, emb_combine, f3, emb_con, emb_abnormal = outs
    assert emb.shape == (1, N, n_h)
    assert emb_combine.shape == (1, NORMAL + A, n_h)
    assert f3.shape == (1, NORMAL + A, 1)
    assert emb_con.shape == (A, n_h)
    assert emb_abnormal.shape == (1, A, n_h)

    # sanity: scattered rows of emb should match emb_con (tolerant of bf16 MXU)
    np.testing.assert_allclose(np.asarray(emb[0, :A]), np.asarray(emb_con),
                               rtol=2e-2, atol=2e-2)

    print("KERNEL_OK")
</pallas_src>

<mosaic_0001>
module attributes {stable_mosaic.version = 11 : i64} {
  func.func @_ggad_fused_kernel(%arg0: i32, %arg1: memref<64x32xf32, #tpu.memory_space<vmem>>, %arg2: memref<64x64xf32, #tpu.memory_space<vmem>>, %arg3: memref<32x32xf32, #tpu.memory_space<vmem>>, %arg4: memref<1x32xf32, #tpu.memory_space<vmem>>, %arg5: memref<1x1xf32, #tpu.memory_space<vmem>>, %arg6: memref<32x32xf32, #tpu.memory_space<vmem>>, %arg7: memref<1x32xf32, #tpu.memory_space<vmem>>, %arg8: memref<1x1xf32, #tpu.memory_space<vmem>>, %arg9: memref<32x32xf32, #tpu.memory_space<vmem>>, %arg10: memref<32x16xf32, #tpu.memory_space<vmem>>, %arg11: memref<16x8xf32, #tpu.memory_space<vmem>>, %arg12: memref<8x1xf32, #tpu.memory_space<vmem>>, %arg13: memref<8x1xi32, #tpu.memory_space<vmem>>, %arg14: memref<1x8xi32, #tpu.memory_space<vmem>>, %arg15: memref<16x1xi32, #tpu.memory_space<vmem>>, %arg16: memref<8x32xf32, #tpu.memory_space<vmem>>, %arg17: memref<64x32xf32, #tpu.memory_space<vmem>>, %arg18: memref<24x32xf32, #tpu.memory_space<vmem>>, %arg19: memref<24x1xf32, #tpu.memory_space<vmem>>, %arg20: memref<8x32xf32, #tpu.memory_space<vmem>>, %arg21: memref<8x32xf32, #tpu.memory_space<vmem>>) attributes {dimension_semantics = [#tpu.dimension_semantics<arbitrary>], iteration_bounds = array<i64: 1>, scalar_prefetch = 0 : i64, scratch_operands = 0 : i64, tpu.core_type = #tpu.core_type<tc>, window_params = [{pipeline_mode = #tpu.pipeline_mode<synchronous>, transform_indices = @transform_0, window_bounds = array<i64: 64, 32>}, {pipeline_mode = #tpu.pipeline_mode<synchronous>, transform_indices = @transform_1, window_bounds = array<i64: 64, 64>}, {pipeline_mode = #tpu.pipeline_mode<synchronous>, transform_indices = @transform_2, window_bounds = array<i64: 32, 32>}, {pipeline_mode = #tpu.pipeline_mode<synchronous>, transform_indices = @transform_3, window_bounds = array<i64: 1, 32>}, {pipeline_mode = #tpu.pipeline_mode<synchronous>, transform_indices = @transform_4, window_bounds = array<i64: 1, 1>}, {pipeline_mode = #tpu.pipeline_mode<synchronous>, transform_indices = @transform_5, window_bounds = array<i64: 32, 32>}, {pipeline_mode = #tpu.pipeline_mode<synchronous>, transform_indices = @transform_6, window_bounds = array<i64: 1, 32>}, {pipeline_mode = #tpu.pipeline_mode<synchronous>, transform_indices = @transform_7, window_bounds = array<i64: 1, 1>}, {pipeline_mode = #tpu.pipeline_mode<synchronous>, transform_indices = @transform_8, window_bounds = array<i64: 32, 32>}, {pipeline_mode = #tpu.pipeline_mode<synchronous>, transform_indices = @transform_9, window_bounds = array<i64: 32, 16>}, {pipeline_mode = #tpu.pipeline_mode<synchronous>, transform_indices = @transform_10, window_bounds = array<i64: 16, 8>}, {pipeline_mode = #tpu.pipeline_mode<synchronous>, transform_indices = @transform_11, window_bounds = array<i64: 8, 1>}, {pipeline_mode = #tpu.pipeline_mode<synchronous>, transform_indices = @transform_12, window_bounds = array<i64: 8, 1>}, {pipeline_mode = #tpu.pipeline_mode<synchronous>, transform_indices = @transform_13, window_bounds = array<i64: 1, 8>}, {pipeline_mode = #tpu.pipeline_mode<synchronous>, transform_indices = @transform_14, window_bounds = array<i64: 16, 1>}, {pipeline_mode = #tpu.pipeline_mode<synchronous>, transform_indices = @transform_15, window_bounds = array<i64: 8, 32>}, {pipeline_mode = #tpu.pipeline_mode<synchronous>, transform_indices = @transform_16, window_bounds = array<i64: 64, 32>}, {pipeline_mode = #tpu.pipeline_mode<synchronous>, transform_indices = @transform_17, window_bounds = array<i64: 24, 32>}, {pipeline_mode = #tpu.pipeline_mode<synchronous>, transform_indices = @transform_18, window_bounds = array<i64: 24, 1>}, {pipeline_mode = #tpu.pipeline_mode<synchronous>, transform_indices = @transform_19, window_bounds = array<i64: 8, 32>}, {pipeline_mode = #tpu.pipeline_mode<synchronous>, transform_indices = @transform_20, window_bounds = array<i64: 8, 32>}]} {
    %c0 = arith.constant 0 : index
    %c0_0 = arith.constant 0 : index
    %0 = vector.load %arg2[%c0, %c0_0] : memref<64x64xf32, #tpu.memory_space<vmem>>, vector<64x64xf32>
    %1 = arith.truncf %0 : vector<64x64xf32> to vector<64x64xbf16>
    %c0_1 = arith.constant 0 : index
    %c0_2 = arith.constant 0 : index
    %2 = vector.load %arg1[%c0_1, %c0_2] : memref<64x32xf32, #tpu.memory_space<vmem>>, vector<64x32xf32>
    %3 = arith.truncf %2 : vector<64x32xf32> to vector<64x32xbf16>
    %c0_3 = arith.constant 0 : index
    %c0_4 = arith.constant 0 : index
    %4 = vector.load %arg3[%c0_3, %c0_4] : memref<32x32xf32, #tpu.memory_space<vmem>>, vector<32x32xf32>
    %5 = arith.truncf %4 : vector<32x32xf32> to vector<32x32xbf16>
    %cst = arith.constant dense<0.000000e+00> : vector<64x32xf32>
    %6 = tpu.matmul %3, %5, %cst {dimension_numbers = #tpu.dot_dimension_numbers<[1], [0], [0], [1], [0, 0, 1, 1], [], []>} : vector<64x32xbf16>, vector<32x32xbf16>, vector<64x32xf32> -> vector<64x32xf32>
    %7 = arith.truncf %6 : vector<64x32xf32> to vector<64x32xbf16>
    %cst_5 = arith.constant dense<0.000000e+00> : vector<64x32xf32>
    %8 = tpu.matmul %1, %7, %cst_5 {dimension_numbers = #tpu.dot_dimension_numbers<[1], [0], [0], [1], [0, 0, 1, 1], [], []>} : vector<64x64xbf16>, vector<64x32xbf16>, vector<64x32xf32> -> vector<64x32xf32>
    %c0_6 = arith.constant 0 : index
    %c0_7 = arith.constant 0 : index
    %9 = vector.load %arg4[%c0_6, %c0_7] : memref<1x32xf32, #tpu.memory_space<vmem>>, vector<1x32xf32>
    %10 = vector.broadcast %9 : vector<1x32xf32> to vector<64x32xf32>
    %11 = arith.addf %8, %10 : vector<64x32xf32>
    %cst_8 = arith.constant 0.000000e+00 : f32
    %12 = vector.broadcast %cst_8 : f32 to vector<64x32xf32>
    %13 = arith.cmpf ogt, %11, %12 : vector<64x32xf32>
    %c0_9 = arith.constant 0 : index
    %c0_10 = arith.constant 0 : index
    %14 = vector.load %arg5[%c0_9, %c0_10] : memref<1x1xf32, #tpu.memory_space<vmem>>, vector<1x1xf32>
    %15 = vector.broadcast %14 : vector<1x1xf32> to vector<64x32xf32>
    %16 = arith.mulf %15, %11 : vector<64x32xf32>
    %17 = arith.select %13, %11, %16 : vector<64x32xi1>, vector<64x32xf32>
    %18 = arith.truncf %17 : vector<64x32xf32> to vector<64x32xbf16>
    %c0_11 = arith.constant 0 : index
    %c0_12 = arith.constant 0 : index
    %19 = vector.load %arg6[%c0_11, %c0_12] : memref<32x32xf32, #tpu.memory_space<vmem>>, vector<32x32xf32>
    %20 = arith.truncf %19 : vector<32x32xf32> to vector<32x32xbf16>
    %cst_13 = arith.constant dense<0.000000e+00> : vector<64x32xf32>
    %21 = tpu.matmul %18, %20, %cst_13 {dimension_numbers = #tpu.dot_dimension_numbers<[1], [0], [0], [1], [0, 0, 1, 1], [], []>} : vector<64x32xbf16>, vector<32x32xbf16>, vector<64x32xf32> -> vector<64x32xf32>
    %22 = arith.truncf %21 : vector<64x32xf32> to vector<64x32xbf16>
    %cst_14 = arith.constant dense<0.000000e+00> : vector<64x32xf32>
    %23 = tpu.matmul %1, %22, %cst_14 {dimension_numbers = #tpu.dot_dimension_numbers<[1], [0], [0], [1], [0, 0, 1, 1], [], []>} : vector<64x64xbf16>, vector<64x32xbf16>, vector<64x32xf32> -> vector<64x32xf32>
    %c0_15 = arith.constant 0 : index
    %c0_16 = arith.constant 0 : index
    %24 = vector.load %arg7[%c0_15, %c0_16] : memref<1x32xf32, #tpu.memory_space<vmem>>, vector<1x32xf32>
    %25 = vector.broadcast %24 : vector<1x32xf32> to vector<64x32xf32>
    %26 = arith.addf %23, %25 : vector<64x32xf32>
    %cst_17 = arith.constant 0.000000e+00 : f32
    %27 = vector.broadcast %cst_17 : f32 to vector<64x32xf32>
    %28 = arith.cmpf ogt, %26, %27 : vector<64x32xf32>
    %c0_18 = arith.constant 0 : index
    %c0_19 = arith.constant 0 : index
    %29 = vector.load %arg8[%c0_18, %c0_19] : memref<1x1xf32, #tpu.memory_space<vmem>>, vector<1x1xf32>
    %30 = vector.broadcast %29 : vector<1x1xf32> to vector<64x32xf32>
    %31 = arith.mulf %30, %26 : vector<64x32xf32>
    %32 = arith.select %28, %26, %31 : vector<64x32xi1>, vector<64x32xf32>
    %33 = tpu.iota {dimensions = array<i32: 1>} : vector<8x64xi32>
    %c0_20 = arith.constant 0 : index
    %c0_21 = arith.constant 0 : index
    %34 = vector.load %arg13[%c0_20, %c0_21] : memref<8x1xi32, #tpu.memory_space<vmem>>, vector<8x1xi32>
    %35 = vector.broadcast %34 : vector<8x1xi32> to vector<8x64xi32>
    %36 = arith.cmpi eq, %33, %35 : vector<8x64xi32>
    %cst_22 = arith.constant 1.000000e+00 : f32
    %cst_23 = arith.constant 0.000000e+00 : f32
    %37 = vector.broadcast %cst_22 : f32 to vector<8x64xf32>
    %38 = vector.broadcast %cst_23 : f32 to vector<8x64xf32>
    %39 = arith.select %36, %37, %38 : vector<8x64xi1>, vector<8x64xf32>
    %40 = tpu.iota {dimensions = array<i32: 1>} : vector<16x64xi32>
    %c0_24 = arith.constant 0 : index
    %c0_25 = arith.constant 0 : index
    %41 = vector.load %arg15[%c0_24, %c0_25] : memref<16x1xi32, #tpu.memory_space<vmem>>, vector<16x1xi32>
    %42 = vector.broadcast %41 : vector<16x1xi32> to vector<16x64xi32>
    %43 = arith.cmpi eq, %40, %42 : vector<16x64xi32>
    %cst_26 = arith.constant 1.000000e+00 : f32
    %cst_27 = arith.constant 0.000000e+00 : f32
    %44 = vector.broadcast %cst_26 : f32 to vector<16x64xf32>
    %45 = vector.broadcast %cst_27 : f32 to vector<16x64xf32>
    %46 = arith.select %43, %44, %45 : vector<16x64xi1>, vector<16x64xf32>
    %47 = tpu.iota {dimensions = array<i32: 0>} : vector<64x8xi32>
    %c0_28 = arith.constant 0 : index
    %c0_29 = arith.constant 0 : index
    %48 = vector.load %arg14[%c0_28, %c0_29] : memref<1x8xi32, #tpu.memory_space<vmem>>, vector<1x8xi32>
    %49 = vector.broadcast %48 : vector<1x8xi32> to vector<64x8xi32>
    %50 = arith.cmpi eq, %47, %49 : vector<64x8xi32>
    %cst_30 = arith.constant 1.000000e+00 : f32
    %cst_31 = arith.constant 0.000000e+00 : f32
    %51 = vector.broadcast %cst_30 : f32 to vector<64x8xf32>
    %52 = vector.broadcast %cst_31 : f32 to vector<64x8xf32>
    %53 = arith.select %50, %51, %52 : vector<64x8xi1>, vector<64x8xf32>
    %cst_32 = arith.constant dense<0.000000e+00> : vector<8x32xf32>
    %54 = tpu.matmul %39, %32, %cst_32 {dimension_numbers = #tpu.dot_dimension_numbers<[1], [0], [0], [1], [0, 0, 1, 1], [], []>} : vector<8x64xf32>, vector<64x32xf32>, vector<8x32xf32> -> vector<8x32xf32>
    %c0_33 = arith.constant 0 : index
    %c0_34 = arith.constant 0 : index
    %55 = vector.load %arg16[%c0_33, %c0_34] : memref<8x32xf32, #tpu.memory_space<vmem>>, vector<8x32xf32>
    %56 = arith.addf %54, %55 : vector<8x32xf32>
    %c0_35 = arith.constant 0 : index
    %c0_36 = arith.constant 0 : index
    %57 = vector.load %arg21[%c0_35, %c0_36] : memref<8x32xf32, #tpu.memory_space<vmem>>, vector<8x32xf32>
    tpu.vector_store %arg21[%c0_35, %c0_36], %56 {strides = array<i32>} : memref<8x32xf32, #tpu.memory_space<vmem>>, vector<8x32xf32>,
    %cst_37 = arith.constant dense<0.000000e+00> : vector<8x64xf32>
    %58 = tpu.matmul %39, %0, %cst_37 {dimension_numbers = #tpu.dot_dimension_numbers<[1], [0], [0], [1], [0, 0, 1, 1], [], []>} : vector<8x64xf32>, vector<64x64xf32>, vector<8x64xf32> -> vector<8x64xf32>
    %59 = arith.truncf %58 : vector<8x64xf32> to vector<8x64xbf16>
    %60 = arith.truncf %32 : vector<64x32xf32> to vector<64x32xbf16>
    %cst_38 = arith.constant dense<0.000000e+00> : vector<8x32xf32>
    %61 = tpu.matmul %59, %60, %cst_38 {dimension_numbers = #tpu.dot_dimension_numbers<[1], [0], [0], [1], [0, 0, 1, 1], [], []>} : vector<8x64xbf16>, vector<64x32xbf16>, vector<8x32xf32> -> vector<8x32xf32>
    %62 = arith.truncf %61 : vector<8x32xf32> to vector<8x32xbf16>
    %c0_39 = arith.constant 0 : index
    %c0_40 = arith.constant 0 : index
    %63 = vector.load %arg9[%c0_39, %c0_40] : memref<32x32xf32, #tpu.memory_space<vmem>>, vector<32x32xf32>
    %64 = arith.truncf %63 : vector<32x32xf32> to vector<32x32xbf16>
    %cst_41 = arith.constant dense<0.000000e+00> : vector<8x32xf32>
    %65 = tpu.matmul %62, %64, %cst_41 {dimension_numbers = #tpu.dot_dimension_numbers<[1], [0], [0], [1], [0, 0, 1, 1], [], []>} : vector<8x32xbf16>, vector<32x32xbf16>, vector<8x32xf32> -> vector<8x32xf32>
    %cst_42 = arith.constant 0.000000e+00 : f32
    %66 = vector.broadcast %cst_42 : f32 to vector<8x32xf32>
    %67 = arith.maximumf %65, %66 : vector<8x32xf32>
    %c0_43 = arith.constant 0 : index
    %c0_44 = arith.constant 0 : index
    %68 = vector.load %arg20[%c0_43, %c0_44] : memref<8x32xf32, #tpu.memory_space<vmem>>, vector<8x32xf32>
    tpu.vector_store %arg20[%c0_43, %c0_44], %67 {strides = array<i32>} : memref<8x32xf32, #tpu.memory_space<vmem>>, vector<8x32xf32>,
    %cst_45 = arith.constant dense<0.000000e+00> : vector<16x32xf32>
    %69 = tpu.matmul %46, %32, %cst_45 {dimension_numbers = #tpu.dot_dimension_numbers<[1], [0], [0], [1], [0, 0, 1, 1], [], []>} : vector<16x64xf32>, vector<64x32xf32>, vector<16x32xf32> -> vector<16x32xf32>
    %c0_46 = arith.constant 0 : index
    %c0_47 = arith.constant 0 : index
    %70 = vector.load %arg18[%c0_46, %c0_47] : memref<24x32xf32, #tpu.memory_space<vmem>>, vector<16x32xf32>
    tpu.vector_store %arg18[%c0_46, %c0_47], %69 {strides = array<i32>} : memref<24x32xf32, #tpu.memory_space<vmem>>, vector<16x32xf32>,
    %c16 = arith.constant 16 : index
    %c0_48 = arith.constant 0 : index
    %71 = vector.load %arg18[%c16, %c0_48] : memref<24x32xf32, #tpu.memory_space<vmem>>, vector<8x32xf32>
    tpu.vector_store %arg18[%c16, %c0_48], %67 {strides = array<i32>} : memref<24x32xf32, #tpu.memory_space<vmem>>, vector<8x32xf32>,
    %c0_49 = arith.constant 0 : index
    %c0_50 = arith.constant 0 : index
    %72 = vector.load %arg18[%c0_49, %c0_50] : memref<24x32xf32, #tpu.memory_space<vmem>>, vector<24x32xf32>
    %73 = arith.truncf %72 : vector<24x32xf32> to vector<24x32xbf16>
    %c0_51 = arith.constant 0 : index
    %c0_52 = arith.constant 0 : index
    %74 = vector.load %arg10[%c0_51, %c0_52] : memref<32x16xf32, #tpu.memory_space<vmem>>, vector<32x16xf32>
    %75 = arith.truncf %74 : vector<32x16xf32> to vector<32x16xbf16>
    %cst_53 = arith.constant dense<0.000000e+00> : vector<24x16xf32>
    %76 = tpu.matmul %73, %75, %cst_53 {dimension_numbers = #tpu.dot_dimension_numbers<[1], [0], [0], [1], [0, 0, 1, 1], [], []>} : vector<24x32xbf16>, vector<32x16xbf16>, vector<24x16xf32> -> vector<24x16xf32>
    %cst_54 = arith.constant 0.000000e+00 : f32
    %77 = vector.broadcast %cst_54 : f32 to vector<24x16xf32>
    %78 = arith.maximumf %76, %77 : vector<24x16xf32>
    %79 = arith.truncf %78 : vector<24x16xf32> to vector<24x16xbf16>
    %c0_55 = arith.constant 0 : index
    %c0_56 = arith.constant 0 : index
    %80 = vector.load %arg11[%c0_55, %c0_56] : memref<16x8xf32, #tpu.memory_space<vmem>>, vector<16x8xf32>
    %81 = arith.truncf %80 : vector<16x8xf32> to vector<16x8xbf16>
    %cst_57 = arith.constant dense<0.000000e+00> : vector<24x8xf32>
    %82 = tpu.matmul %79, %81, %cst_57 {dimension_numbers = #tpu.dot_dimension_numbers<[1], [0], [0], [1], [0, 0, 1, 1], [], []>} : vector<24x16xbf16>, vector<16x8xbf16>, vector<24x8xf32> -> vector<24x8xf32>
    %cst_58 = arith.constant 0.000000e+00 : f32
    %83 = vector.broadcast %cst_58 : f32 to vector<24x8xf32>
    %84 = arith.maximumf %82, %83 : vector<24x8xf32>
    %85 = arith.truncf %84 : vector<24x8xf32> to vector<24x8xbf16>
    %c0_59 = arith.constant 0 : index
    %c0_60 = arith.constant 0 : index
    %86 = vector.load %arg12[%c0_59, %c0_60] : memref<8x1xf32, #tpu.memory_space<vmem>>, vector<8x1xf32>
    %87 = arith.truncf %86 : vector<8x1xf32> to vector<8x1xbf16>
    %cst_61 = arith.constant dense<0.000000e+00> : vector<24x1xf32>
    %88 = tpu.matmul %85, %87, %cst_61 {dimension_numbers = #tpu.dot_dimension_numbers<[1], [0], [0], [1], [0, 0, 1, 1], [], []>} : vector<24x8xbf16>, vector<8x1xbf16>, vector<24x1xf32> -> vector<24x1xf32>
    %c0_62 = arith.constant 0 : index
    %c0_63 = arith.constant 0 : index
    %89 = vector.load %arg19[%c0_62, %c0_63] : memref<24x1xf32, #tpu.memory_space<vmem>>, vector<24x1xf32>
    tpu.vector_store %arg19[%c0_62, %c0_63], %88 {strides = array<i32>} : memref<24x1xf32, #tpu.memory_space<vmem>>, vector<24x1xf32>,
    %cst_64 = arith.constant dense<0.000000e+00> : vector<64x32xf32>
    %90 = tpu.matmul %53, %67, %cst_64 {dimension_numbers = #tpu.dot_dimension_numbers<[1], [0], [0], [1], [0, 0, 1, 1], [], []>} : vector<64x8xf32>, vector<8x32xf32>, vector<64x32xf32> -> vector<64x32xf32>
    %cst_65 = arith.constant dense<0.000000e+00> : vector<64xf32>
    %91 = vector.multi_reduction <add>, %53, %cst_65 [1] : vector<64x8xf32> to vector<64xf32>
    %92 = vector.shape_cast %91 : vector<64xf32> to vector<64x1xf32>
    %cst_66 = arith.constant 1.000000e+00 : f32
    %93 = vector.broadcast %cst_66 : f32 to vector<64x1xf32>
    %94 = arith.subf %93, %92 : vector<64x1xf32>
    %95 = vector.broadcast %94 : vector<64x1xf32> to vector<64x32xf32>
    %96 = arith.mulf %32, %95 : vector<64x32xf32>
    %97 = arith.addf %96, %90 : vector<64x32xf32>
    %c0_67 = arith.constant 0 : index
    %c0_68 = arith.constant 0 : index
    %98 = vector.load %arg17[%c0_67, %c0_68] : memref<64x32xf32, #tpu.memory_space<vmem>>, vector<64x32xf32>
    tpu.vector_store %arg17[%c0_67, %c0_68], %97 {strides = array<i32>} : memref<64x32xf32, #tpu.memory_space<vmem>>, vector<64x32xf32>,
    return
  }
  func.func @transform_0(%arg0: i32) -> (i32, i32) {
    %c0_i32 = arith.constant 0 : i32
    %c0_i32_0 = arith.constant 0 : i32
    %c0_i32_1 = arith.constant 0 : i32
    return %c0_i32, %c0_i32_0 : i32, i32
  }
  func.func @transform_1(%arg0: i32) -> (i32, i32) {
    %c0_i32 = arith.constant 0 : i32
    %c0_i32_0 = arith.constant 0 : i32
    %c0_i32_1 = arith.constant 0 : i32
    return %c0_i32, %c0_i32_0 : i32, i32
  }
  func.func @transform_2(%arg0: i32) -> (i32, i32) {
    %c0_i32 = arith.constant 0 : i32
    %c0_i32_0 = arith.constant 0 : i32
    %c0_i32_1 = arith.constant 0 : i32
    return %c0_i32, %c0_i32_0 : i32, i32
  }
  func.func @transform_3(%arg0: i32) -> (i32, i32) {
    %c0_i32 = arith.constant 0 : i32
    %c0_i32_0 = arith.constant 0 : i32
    %c0_i32_1 = arith.constant 0 : i32
    return %c0_i32, %c0_i32_0 : i32, i32
  }
  func.func @transform_4(%arg0: i32) -> (i32, i32) {
    %c0_i32 = arith.constant 0 : i32
    %c0_i32_0 = arith.constant 0 : i32
    %c0_i32_1 = arith.constant 0 : i32
    return %c0_i32, %c0_i32_0 : i32, i32
  }
  func.func @transform_5(%arg0: i32) -> (i32, i32) {
    %c0_i32 = arith.constant 0 : i32
    %c0_i32_0 = arith.constant 0 : i32
    %c0_i32_1 = arith.constant 0 : i32
    return %c0_i32, %c0_i32_0 : i32, i32
  }
  func.func @transform_6(%arg0: i32) -> (i32, i32) {
    %c0_i32 = arith.constant 0 : i32
    %c0_i32_0 = arith.constant 0 : i32
    %c0_i32_1 = arith.constant 0 : i32
    return %c0_i32, %c0_i32_0 : i32, i32
  }
  func.func @transform_7(%arg0: i32) -> (i32, i32) {
    %c0_i32 = arith.constant 0 : i32
    %c0_i32_0 = arith.constant 0 : i32
    %c0_i32_1 = arith.constant 0 : i32
    return %c0_i32, %c0_i32_0 : i32, i32
  }
  func.func @transform_8(%arg0: i32) -> (i32, i32) {
    %c0_i32 = arith.constant 0 : i32
    %c0_i32_0 = arith.constant 0 : i32
    %c0_i32_1 = arith.constant 0 : i32
    return %c0_i32, %c0_i32_0 : i32, i32
  }
  func.func @transform_9(%arg0: i32) -> (i32, i32) {
    %c0_i32 = arith.constant 0 : i32
    %c0_i32_0 = arith.constant 0 : i32
    %c0_i32_1 = arith.constant 0 : i32
    return %c0_i32, %c0_i32_0 : i32, i32
  }
  func.func @transform_10(%arg0: i32) -> (i32, i32) {
    %c0_i32 = arith.constant 0 : i32
    %c0_i32_0 = arith.constant 0 : i32
    %c0_i32_1 = arith.constant 0 : i32
    return %c0_i32, %c0_i32_0 : i32, i32
  }
  func.func @transform_11(%arg0: i32) -> (i32, i32) {
    %c0_i32 = arith.constant 0 : i32
    %c0_i32_0 = arith.constant 0 : i32
    %c0_i32_1 = arith.constant 0 : i32
    return %c0_i32, %c0_i32_0 : i32, i32
  }
  func.func @transform_12(%arg0: i32) -> (i32, i32) {
    %c0_i32 = arith.constant 0 : i32
    %c0_i32_0 = arith.constant 0 : i32
    %c0_i32_1 = arith.constant 0 : i32
    return %c0_i32, %c0_i32_0 : i32, i32
  }
  func.func @transform_13(%arg0: i32) -> (i32, i32) {
    %c0_i32 = arith.constant 0 : i32
    %c0_i32_0 = arith.constant 0 : i32
    %c0_i32_1 = arith.constant 0 : i32
    return %c0_i32, %c0_i32_0 : i32, i32
  }
  func.func @transform_14(%arg0: i32) -> (i32, i32) {
    %c0_i32 = arith.constant 0 : i32
    %c0_i32_0 = arith.constant 0 : i32
    %c0_i32_1 = arith.constant 0 : i32
    return %c0_i32, %c0_i32_0 : i32, i32
  }
  func.func @transform_15(%arg0: i32) -> (i32, i32) {
    %c0_i32 = arith.constant 0 : i32
    %c0_i32_0 = arith.constant 0 : i32
    %c0_i32_1 = arith.constant 0 : i32
    return %c0_i32, %c0_i32_0 : i32, i32
  }
  func.func @transform_16(%arg0: i32) -> (i32, i32) {
    %c0_i32 = arith.constant 0 : i32
    %c0_i32_0 = arith.constant 0 : i32
    %c0_i32_1 = arith.constant 0 : i32
    return %c0_i32, %c0_i32_0 : i32, i32
  }
  func.func @transform_17(%arg0: i32) -> (i32, i32) {
    %c0_i32 = arith.constant 0 : i32
    %c0_i32_0 = arith.constant 0 : i32
    %c0_i32_1 = arith.constant 0 : i32
    return %c0_i32, %c0_i32_0 : i32, i32
  }
  func.func @transform_18(%arg0: i32) -> (i32, i32) {
    %c0_i32 = arith.constant 0 : i32
    %c0_i32_0 = arith.constant 0 : i32
    %c0_i32_1 = arith.constant 0 : i32
    return %c0_i32, %c0_i32_0 : i32, i32
  }
  func.func @transform_19(%arg0: i32) -> (i32, i32) {
    %c0_i32 = arith.constant 0 : i32
    %c0_i32_0 = arith.constant 0 : i32
    %c0_i32_1 = arith.constant 0 : i32
    return %c0_i32, %c0_i32_0 : i32, i32
  }
  func.func @transform_20(%arg0: i32) -> (i32, i32) {
    %c0_i32 = arith.constant 0 : i32
    %c0_i32_0 = arith.constant 0 : i32
    %c0_i32_1 = arith.constant 0 : i32
    return %c0_i32, %c0_i32_0 : i32, i32
  }
}

</mosaic_0001>

<llo_original>
// kernel: ggad_forward.1
$region0: #{ggad_forward.1}
  #allocation0 [shape = 'u32[]', space=smem, size = 0x4, offset = 0x4, fixed_abs, tag = 'smem constant byte address 0x4 - core index']
  #allocation1 [shape = 'u32[72,128]{1,0:T(1,128)}', space=vmem, size = 0x9000, scoped, tag = 'internal scratch']
  #allocation2 [shape = 'f32[1,1]{1,0:T(1,128)S(1)}', space=vmem, size = 0x200, scoped, tag = 'scoped memory for ggad_forward.1']
  #allocation3 [shape = 'f32[1,1]{1,0:T(1,128)S(1)}', space=vmem, size = 0x200, scoped, tag = 'scoped memory for ggad_forward.1']
  %s0 = inlined_call_operand.vmem [shape: f32[64,32], index: 0, kind: input, shape index: {}]
  %s1 = inlined_call_operand.vmem [shape: f32[64,64], index: 1, kind: input, shape index: {}]
  %s2 = inlined_call_operand.vmem [shape: f32[32,32], index: 2, kind: input, shape index: {}]
  %s3 = inlined_call_operand.hbm [shape: f32[1,32], index: 3, kind: input, shape index: {}]
  %s4 = inlined_call_operand.<no memory space> [shape: f32[1,1], index: 4, kind: input, shape index: {}]
  %s5 = inlined_call_operand.vmem [shape: f32[32,32], index: 5, kind: input, shape index: {}]
  %s6 = inlined_call_operand.hbm [shape: f32[1,32], index: 6, kind: input, shape index: {}]
  %s7 = inlined_call_operand.<no memory space> [shape: f32[1,1], index: 7, kind: input, shape index: {}]
  %s8 = inlined_call_operand.vmem [shape: f32[32,32], index: 8, kind: input, shape index: {}]
  %s9 = inlined_call_operand.vmem [shape: f32[32,16], index: 9, kind: input, shape index: {}]
  %s10 = inlined_call_operand.vmem [shape: f32[16,8], index: 10, kind: input, shape index: {}]
  %s11 = inlined_call_operand.vmem [shape: f32[8,1], index: 11, kind: input, shape index: {}]
  %s12 = inlined_call_operand.vmem [shape: s32[8,1], index: 12, kind: input, shape index: {}]
  %s13 = inlined_call_operand.vmem [shape: s32[1,8], index: 13, kind: input, shape index: {}]
  %s14 = inlined_call_operand.vmem [shape: s32[16,1], index: 14, kind: input, shape index: {}]
  %s15 = inlined_call_operand.vmem [shape: f32[8,32], index: 15, kind: input, shape index: {}]
  %s16 = inlined_call_operand.vmem [shape: f32[64,32], index: 16, kind: output, shape index: {0}]
  %s17 = inlined_call_operand.hbm [shape: f32[24,32], index: 17, kind: output, shape index: {1}]
  %s18 = inlined_call_operand.vmem [shape: f32[24,1], index: 18, kind: output, shape index: {2}]
  %s19 = inlined_call_operand.hbm [shape: f32[8,32], index: 19, kind: output, shape index: {3}]
  %s20 = inlined_call_operand.hbm [shape: f32[8,32], index: 20, kind: output, shape index: {4}]
  %21 = xla_tuple %s16, %s17, %s18, %s19, %s20
  %s22 = sld [smem:[#allocation0]]
  $region114: #{ggad_forward.1} parent=0
    _
  %s24 = ssub.s32 1, %s22
  %s25 = scalar_select 0, %s24, %s22
  %v26 = vstv %s4
  %27 = vst [vmem:[#allocation2] sm:$0x1] %v26
  %v28 = vstv %s7
  %29 = vst [vmem:[#allocation3] sm:$0x1] %v28
  $region1: #{ggad_forward.1} parent=0
    #allocation4 [shape = 'u8[512]{0}', space=vmem, size = 0x400, scoped, tag = 'input window, operand 3, single buffered']
    #allocation5 [shape = 's32[1]{0}', space=sflag, size = 0x4, scoped, tag = 'scoped memory for ggad_forward.1']
    #allocation6 [shape = 's32[1]{0}', space=sflag, size = 0x4, scoped, tag = 'scoped memory for ggad_forward.1']
    #allocation7 [shape = 'u8[512]{0}', space=vmem, size = 0x400, scoped, tag = 'input window, operand 6, single buffered']
    #allocation8 [shape = 's32[1]{0}', space=sflag, size = 0x4, scoped, tag = 'scoped memory for ggad_forward.1']
    #allocation9 [shape = 'u8[12288]{0}', space=vmem, size = 0x3000, scoped, tag = 'output window, operand 1, single buffered']
    #allocation10 [shape = 'u8[4096]{0}', space=vmem, size = 0x1000, scoped, tag = 'output window, operand 3, single buffered']
    #allocation11 [shape = 's32[1]{0}', space=sflag, size = 0x4, scoped, tag = 'scoped memory for ggad_forward.1']
    #allocation12 [shape = 'u8[4096]{0}', space=vmem, size = 0x1000, scoped, tag = 'output window, operand 4, single buffered']
    %30 = vsyncpa [#allocation5], 0
    %31 = vsyncpa [#allocation8], 0
    %32 = vsyncpa [#allocation6], 0
    %33 = vsyncpa [#allocation11], 0
    // Predicated region
    $region2: #{ggad_forward.1} parent=1 // pred_check
      _
    $region3: #{ggad_forward.1} parent=1 // pred_check_branch
      %35 = sbr.rel (0) target = $region5
    $region4: #{ggad_forward.1} parent=1 // pred_region
      _
    $region5: #{ggad_forward.1} parent=1 // pred_fallthru
      _
    // Predicated region
    $region6: #{ggad_forward.1} parent=1 // pred_check
      _
    $region7: #{ggad_forward.1} parent=1 // pred_check_branch
      %37 = sbr.rel (0) target = $region9
    $region8: #{ggad_forward.1} parent=1 // pred_region
      _
    $region9: #{ggad_forward.1} parent=1 // pred_fallthru
      _
    // Predicated region
    $region10: #{ggad_forward.1} parent=1 // pred_check
      _
    $region11: #{ggad_forward.1} parent=1 // pred_check_branch
      %39 = sbr.rel (0) target = $region13
    $region12: #{ggad_forward.1} parent=1 // pred_region
      _
    $region13: #{ggad_forward.1} parent=1 // pred_fallthru
      _
    // Predicated region
    $region14: #{ggad_forward.1} parent=1 // pred_check
      _
    $region15: #{ggad_forward.1} parent=1 // pred_check_branch
      %41 = sbr.rel (0) target = $region17
    $region16: #{ggad_forward.1} parent=1 // pred_region
      %43 = vsyncadd [#allocation5], 0
      %s45 = sshll.u32 %s3, 4
      %s46 = int_to_ptr.hbm [resolvable:$true] %s45
      %s47 = sshll.u32 [#allocation4], 4
      %s48 = int_to_ptr.vmem [resolvable:$true] %s47
      %50 = dma.hbm_to_vmem [thread:$0]  %s46, 16, %s48, [#allocation5]
    $region17: #{ggad_forward.1} parent=1 // pred_fallthru
      _
    // Predicated region
    $region18: #{ggad_forward.1} parent=1 // pred_check
      _
    $region19: #{ggad_forward.1} parent=1 // pred_check_branch
      %52 = sbr.rel (0) target = $region21
    $region20: #{ggad_forward.1} parent=1 // pred_region
      _
    $region21: #{ggad_forward.1} parent=1 // pred_fallthru
      _
    // Predicated region
    $region22: #{ggad_forward.1} parent=1 // pred_check
      _
    $region23: #{ggad_forward.1} parent=1 // pred_check_branch
      %54 = sbr.rel (0) target = $region25
    $region24: #{ggad_forward.1} parent=1 // pred_region
      _
    $region25: #{ggad_forward.1} parent=1 // pred_fallthru
      _
    // Predicated region
    $region26: #{ggad_forward.1} parent=1 // pred_check
      _
    $region27: #{ggad_forward.1} parent=1 // pred_check_branch
      %56 = sbr.rel (0) target = $region29
    $region28: #{ggad_forward.1} parent=1 // pred_region
      %58 = vsyncadd [#allocation8], 0
      %s60 = sshll.u32 %s6, 4
      %s61 = int_to_ptr.hbm [resolvable:$true] %s60
      %s62 = sshll.u32 [#allocation7], 4
      %s63 = int_to_ptr.vmem [resolvable:$true] %s62
      %65 = dma.hbm_to_vmem [thread:$0]  %s61, 16, %s63, [#allocation8]
    $region29: #{ggad_forward.1} parent=1 // pred_fallthru
      _
    // Predicated region
    $region30: #{ggad_forward.1} parent=1 // pred_check
      _
    $region31: #{ggad_forward.1} parent=1 // pred_check_branch
      %67 = sbr.rel (0) target = $region33
    $region32: #{ggad_forward.1} parent=1 // pred_region
      _
    $region33: #{ggad_forward.1} parent=1 // pred_fallthru
      _
    // Predicated region
    $region34: #{ggad_forward.1} parent=1 // pred_check
      _
    $region35: #{ggad_forward.1} parent=1 // pred_check_branch
      %69 = sbr.rel (0) target = $region37
    $region36: #{ggad_forward.1} parent=1 // pred_region
      _
    $region37: #{ggad_forward.1} parent=1 // pred_fallthru
      _
    // Predicated region
    $region38: #{ggad_forward.1} parent=1 // pred_check
      _
    $region39: #{ggad_forward.1} parent=1 // pred_check_branch
      %71 = sbr.rel (0) target = $region41
    $region40: #{ggad_forward.1} parent=1 // pred_region
      _
    $region41: #{ggad_forward.1} parent=1 // pred_fallthru
      _
    // Predicated region
    $region42: #{ggad_forward.1} parent=1 // pred_check
      _
    $region43: #{ggad_forward.1} parent=1 // pred_check_branch
      %73 = sbr.rel (0) target = $region45
    $region44: #{ggad_forward.1} parent=1 // pred_region
      _
    $region45: #{ggad_forward.1} parent=1 // pred_fallthru
      _
    // Predicated region
    $region46: #{ggad_forward.1} parent=1 // pred_check
      _
    $region47: #{ggad_forward.1} parent=1 // pred_check_branch
      %75 = sbr.rel (0) target = $region49
    $region48: #{ggad_forward.1} parent=1 // pred_region
      _
    $region49: #{ggad_forward.1} parent=1 // pred_fallthru
      _
    // Predicated region
    $region50: #{ggad_forward.1} parent=1 // pred_check
      _
    $region51: #{ggad_forward.1} parent=1 // pred_check_branch
      %77 = sbr.rel (0) target = $region53
    $region52: #{ggad_forward.1} parent=1 // pred_region
      _
    $region53: #{ggad_forward.1} parent=1 // pred_fallthru
      _
    // Predicated region
    $region54: #{ggad_forward.1} parent=1 // pred_check
      _
    $region55: #{ggad_forward.1} parent=1 // pred_check_branch
      %79 = sbr.rel (0) target = $region57
    $region56: #{ggad_forward.1} parent=1 // pred_region
      _
    $region57: #{ggad_forward.1} parent=1 // pred_fallthru
      _
    // Predicated region
    $region58: #{ggad_forward.1} parent=1 // pred_check
      _
    $region59: #{ggad_forward.1} parent=1 // pred_check_branch
      %81 = sbr.rel (0) target = $region61
    $region60: #{ggad_forward.1} parent=1 // pred_region
      _
    $region61: #{ggad_forward.1} parent=1 // pred_fallthru
      _
    // Predicated region
    $region62: #{ggad_forward.1} parent=1 // pred_check
      _
    $region63: #{ggad_forward.1} parent=1 // pred_check_branch
      %83 = sbr.rel (0) target = $region65
    $region64: #{ggad_forward.1} parent=1 // pred_region
      _
    $region65: #{ggad_forward.1} parent=1 // pred_fallthru
      _
    // Predicated region
    $region66: #{ggad_forward.1} parent=1 // pred_check
      _
    $region67: #{ggad_forward.1} parent=1 // pred_check_branch
      %85 = sbr.rel (0) target = $region69
    $region68: #{ggad_forward.1} parent=1 // pred_region
      %87 = dma.done [#allocation5], 16
    $region69: #{ggad_forward.1} parent=1 // pred_fallthru
      _
    // Predicated region
    $region70: #{ggad_forward.1} parent=1 // pred_check
      _
    $region71: #{ggad_forward.1} parent=1 // pred_check_branch
      %89 = sbr.rel (0) target = $region73
    $region72: #{ggad_forward.1} parent=1 // pred_region
      %91 = dma.done [#allocation8], 16
    $region73: #{ggad_forward.1} parent=1 // pred_fallthru
      _
    %v93 = vld [vmem:[%s1] sm:$0xff]
    %v94 = vld [vmem:[%s1 + $0x8] sm:$0xff]
    %v95 = vld [vmem:[%s1 + $0x10] sm:$0xff]
    %v96 = vld [vmem:[%s1 + $0x18] sm:$0xff]
    %v97 = vld [vmem:[%s1 + $0x20] sm:$0xff]
    %v98 = vld [vmem:[%s1 + $0x28] sm:$0xff]
    %v99 = vld [vmem:[%s1 + $0x30] sm:$0xff]
    %v100 = vld [vmem:[%s1 + $0x38] sm:$0xff]
    %v101 = vpack.c.bf16 %v94, %v93
    %v102 = vpack.c.bf16 %v96, %v95
    %v103 = vpack.c.bf16 %v98, %v97
    %v104 = vpack.c.bf16 %v100, %v99
    %v105 = vld [vmem:[%s0] sm:$0xff]
    %v106 = vld [vmem:[%s0 + $0x8] sm:$0xff]
    %v107 = vld [vmem:[%s0 + $0x10] sm:$0xff]
    %v108 = vld [vmem:[%s0 + $0x18] sm:$0xff]
    %v109 = vld [vmem:[%s0 + $0x20] sm:$0xff]
    %v110 = vld [vmem:[%s0 + $0x28] sm:$0xff]
    %v111 = vld [vmem:[%s0 + $0x30] sm:$0xff]
    %v112 = vld [vmem:[%s0 + $0x38] sm:$0xff]
    %v113 = vpack.c.bf16 %v106, %v105
    %v114 = vpack.c.bf16 %v108, %v107
    %v115 = vpack.c.bf16 %v110, %v109
    %v116 = vpack.c.bf16 %v112, %v111
    %v117 = vld [vmem:[%s2] sm:$0xff]
    %v118 = vld [vmem:[%s2 + $0x8] sm:$0xff]
    %v119 = vld [vmem:[%s2 + $0x10] sm:$0xff]
    %v120 = vld [vmem:[%s2 + $0x18] sm:$0xff]
    %v121 = vpack.c.bf16 %v118, %v117
    %v122 = vpack.c.bf16 %v120, %v119
    %vm123 = vcmask 261120
    %v125 = vsel %vm123, %v113, 0
    %v128 = vsel %vm123, %v114, 0
    %v131 = vsel %vm123, %v115, 0
    %v134 = vsel %vm123, %v116, 0
    %136 = vmatpush.bf16.msra.mxu0 0
    %137 = vmatpush.bf16.msra.mxu0 0
    %138 = vmatpush.bf16.msra.mxu0 0
    %139 = vmatpush.bf16.msra.mxu0 0
    %140 = vmatpush.bf16.msra.mxu0 0
    %141 = vmatpush.bf16.msra.mxu0 0
    %142 = vmatpush.bf16.msra.mxu0 %v122
    %143 = vmatpush.bf16.msra.mxu0 %v121
    %144 = vmatmul.bf16.gmra.mxu0 %v125
    %v145 = vpop.f32.mrf.mxu0
    %v146 = vadd.f32 0.0, %v145
    %v147 = vpop.f32.mrf.mxu0
    %v148 = vadd.f32 0.0, %v147
    %149 = vmatmul.bf16.gmra.mxu0 %v128
    %v150 = vpop.f32.mrf.mxu0
    %v151 = vadd.f32 0.0, %v150
    %v152 = vpop.f32.mrf.mxu0
    %v153 = vadd.f32 0.0, %v152
    %154 = vmatmul.bf16.gmra.mxu0 %v131
    %v155 = vpop.f32.mrf.mxu0
    %v156 = vadd.f32 0.0, %v155
    %v157 = vpop.f32.mrf.mxu0
    %v158 = vadd.f32 0.0, %v157
    %159 = vmatmul.bf16.gmra.mxu0 %v134
    %v160 = vpop.f32.mrf.mxu0
    %v161 = vadd.f32 0.0, %v160
    %v162 = vpop.f32.mrf.mxu0
    %v163 = vadd.f32 0.0, %v162
    %164 = vdwg.mxu0
    %v165 = vpack.c.bf16 %v148, %v146
    %v166 = vpack.c.bf16 %v153, %v151
    %v167 = vpack.c.bf16 %v158, %v156
    %v168 = vpack.c.bf16 %v163, %v161
    %v169 = vld [vmem:[#allocation4] sm:$0x1]
    %v171 = vperm.slane %v169, 0
    %vm173 = vcmask 523264
    %v175 = vsel %vm173, %v101, 0
    %v178 = vsel %vm173, %v102, 0
    %v181 = vsel %vm173, %v103, 0
    %v184 = vsel %vm173, %v104, 0
    %186 = vmatpush.bf16.msra.mxu0 0
    %187 = vmatpush.bf16.msra.mxu0 0
    %188 = vmatpush.bf16.msra.mxu0 0
    %189 = vmatpush.bf16.msra.mxu0 0
    %190 = vmatpush.bf16.msra.mxu0 %v168
    %191 = vmatpush.bf16.msra.mxu0 %v167
    %192 = vmatpush.bf16.msra.mxu0 %v166
    %193 = vmatpush.bf16.msra.mxu0 %v165
    %194 = vmatmul.bf16.gmra.mxu0 %v175
    %v195 = vpop.f32.mrf.mxu0
    %v196 = vadd.f32 %v171, %v195
    %v197 = vpop.f32.mrf.mxu0
    %v198 = vadd.f32 %v171, %v197
    %199 = vmatmul.bf16.gmra.mxu0 %v178
    %v200 = vpop.f32.mrf.mxu0
    %v201 = vadd.f32 %v171, %v200
    %v202 = vpop.f32.mrf.mxu0
    %v203 = vadd.f32 %v171, %v202
    %204 = vmatmul.bf16.gmra.mxu0 %v181
    %v205 = vpop.f32.mrf.mxu0
    %v206 = vadd.f32 %v171, %v205
    %v207 = vpop.f32.mrf.mxu0
    %v208 = vadd.f32 %v171, %v207
    %209 = vmatmul.bf16.gmra.mxu0 %v184
    %v210 = vpop.f32.mrf.mxu0
    %v211 = vadd.f32 %v171, %v210
    %v212 = vpop.f32.mrf.mxu0
    %v213 = vadd.f32 %v171, %v212
    %214 = vdwg.mxu0
    %vm215 = vcmp.gt.f32.partialorder %v196, 0.0
    %vm216 = vcmp.gt.f32.partialorder %v198, 0.0
    %vm217 = vcmp.gt.f32.partialorder %v201, 0.0
    %vm218 = vcmp.gt.f32.partialorder %v203, 0.0
    %vm219 = vcmp.gt.f32.partialorder %v206, 0.0
    %vm220 = vcmp.gt.f32.partialorder %v208, 0.0
    %vm221 = vcmp.gt.f32.partialorder %v211, 0.0
    %vm222 = vcmp.gt.f32.partialorder %v213, 0.0
    %v223 = vld [vmem:[#allocation2] sm:$0x1]
    %v225 = vperm.slane %v223, 0
    %226 = vset.pattern.permute.xlu0 0
    %227 = vperm.xlu0 %226, %v225
    %v228 = vpop.permute.xlu0 %227
    %v230 = vmul.f32 %v228, %v196
    %v231 = vmul.f32 %v228, %v198
    %v232 = vmul.f32 %v228, %v201
    %v233 = vmul.f32 %v228, %v203
    %v234 = vmul.f32 %v228, %v206
    %v235 = vmul.f32 %v228, %v208
    %v236 = vmul.f32 %v228, %v211
    %v237 = vmul.f32 %v228, %v213
    %v238 = vsel %vm215, %v196, %v230
    %v239 = vsel %vm216, %v198, %v231
    %v240 = vsel %vm217, %v201, %v232
    %v241 = vsel %vm218, %v203, %v233
    %v242 = vsel %vm219, %v206, %v234
    %v243 = vsel %vm220, %v208, %v235
    %v244 = vsel %vm221, %v211, %v236
    %v245 = vsel %vm222, %v213, %v237
    %v246 = vpack.c.bf16 %v239, %v238
    %v247 = vpack.c.bf16 %v241, %v240
    %v248 = vpack.c.bf16 %v243, %v242
    %v249 = vpack.c.bf16 %v245, %v244
    %v250 = vld [vmem:[%s5] sm:$0xff]
    %v251 = vld [vmem:[%s5 + $0x8] sm:$0xff]
    %v252 = vld [vmem:[%s5 + $0x10] sm:$0xff]
    %v253 = vld [vmem:[%s5 + $0x18] sm:$0xff]
    %v254 = vpack.c.bf16 %v251, %v250
    %v255 = vpack.c.bf16 %v253, %v252
    %v257 = vsel %vm123, %v246, 0
    %v260 = vsel %vm123, %v247, 0
    %v263 = vsel %vm123, %v248, 0
    %v266 = vsel %vm123, %v249, 0
    %268 = vmatpush.bf16.msra.mxu0 0
    %269 = vmatpush.bf16.msra.mxu0 0
    %270 = vmatpush.bf16.msra.mxu0 0
    %271 = vmatpush.bf16.msra.mxu0 0
    %272 = vmatpush.bf16.msra.mxu0 0
    %273 = vmatpush.bf16.msra.mxu0 0
    %274 = vmatpush.bf16.msra.mxu0 %v255
    %275 = vmatpush.bf16.msra.mxu0 %v254
    %276 = vmatmul.bf16.gmra.mxu0 %v257
    %v277 = vpop.f32.mrf.mxu0
    %v278 = vadd.f32 0.0, %v277
    %v279 = vpop.f32.mrf.mxu0
    %v280 = vadd.f32 0.0, %v279
    %281 = vmatmul.bf16.gmra.mxu0 %v260
    %v282 = vpop.f32.mrf.mxu0
    %v283 = vadd.f32 0.0, %v282
    %v284 = vpop.f32.mrf.mxu0
    %v285 = vadd.f32 0.0, %v284
    %286 = vmatmul.bf16.gmra.mxu0 %v263
    %v287 = vpop.f32.mrf.mxu0
    %v288 = vadd.f32 0.0, %v287
    %v289 = vpop.f32.mrf.mxu0
    %v290 = vadd.f32 0.0, %v289
    %291 = vmatmul.bf16.gmra.mxu0 %v266
    %v292 = vpop.f32.mrf.mxu0
    %v293 = vadd.f32 0.0, %v292
    %v294 = vpop.f32.mrf.mxu0
    %v295 = vadd.f32 0.0, %v294
    %296 = vdwg.mxu0
    %v297 = vpack.c.bf16 %v280, %v278
    %v298 = vpack.c.bf16 %v285, %v283
    %v299 = vpack.c.bf16 %v290, %v288
    %v300 = vpack.c.bf16 %v295, %v293
    %v301 = vld [vmem:[#allocation7] sm:$0x1]
    %v303 = vperm.slane %v301, 0
    %305 = vmatpush.bf16.msra.mxu0 0
    %306 = vmatpush.bf16.msra.mxu0 0
    %307 = vmatpush.bf16.msra.mxu0 0
    %308 = vmatpush.bf16.msra.mxu0 0
    %309 = vmatpush.bf16.msra.mxu0 %v300
    %310 = vmatpush.bf16.msra.mxu0 %v299
    %311 = vmatpush.bf16.msra.mxu0 %v298
    %312 = vmatpush.bf16.msra.mxu0 %v297
    %313 = vmatmul.bf16.gmra.mxu0 %v175
    %v314 = vpop.f32.mrf.mxu0
    %v315 = vadd.f32 %v303, %v314
    %v316 = vpop.f32.mrf.mxu0
    %v317 = vadd.f32 %v303, %v316
    %318 = vmatmul.bf16.gmra.mxu0 %v178
    %v319 = vpop.f32.mrf.mxu0
    %v320 = vadd.f32 %v303, %v319
    %v321 = vpop.f32.mrf.mxu0
    %v322 = vadd.f32 %v303, %v321
    %323 = vmatmul.bf16.gmra.mxu0 %v181
    %v324 = vpop.f32.mrf.mxu0
    %v325 = vadd.f32 %v303, %v324
    %v326 = vpop.f32.mrf.mxu0
    %v327 = vadd.f32 %v303, %v326
    %328 = vmatmul.bf16.gmra.mxu0 %v184
    %v329 = vpop.f32.mrf.mxu0
    %v330 = vadd.f32 %v303, %v329
    %v331 = vpop.f32.mrf.mxu0
    %v332 = vadd.f32 %v303, %v331
    %333 = vdwg.mxu0
    %vm334 = vcmp.gt.f32.partialorder %v315, 0.0
    %vm335 = vcmp.gt.f32.partialorder %v317, 0.0
    %vm336 = vcmp.gt.f32.partialorder %v320, 0.0
    %vm337 = vcmp.gt.f32.partialorder %v322, 0.0
    %vm338 = vcmp.gt.f32.partialorder %v325, 0.0
    %vm339 = vcmp.gt.f32.partialorder %v327, 0.0
    %vm340 = vcmp.gt.f32.partialorder %v330, 0.0
    %vm341 = vcmp.gt.f32.partialorder %v332, 0.0
    %v342 = vld [vmem:[#allocation3] sm:$0x1]
    %v344 = vperm.slane %v342, 0
    %345 = vset.pattern.permute.xlu0 0
    %346 = vperm.xlu0 %345, %v344
    %v347 = vpop.permute.xlu0 %346
    %v349 = vmul.f32 %v347, %v315
    %v350 = vmul.f32 %v347, %v317
    %v351 = vmul.f32 %v347, %v320
    %v352 = vmul.f32 %v347, %v322
    %v353 = vmul.f32 %v347, %v325
    %v354 = vmul.f32 %v347, %v327
    %v355 = vmul.f32 %v347, %v330
    %v356 = vmul.f32 %v347, %v332
    %v357 = vsel %vm334, %v315, %v349
    %v358 = vsel %vm335, %v317, %v350
    %v359 = vsel %vm336, %v320, %v351
    %v360 = vsel %vm337, %v322, %v352
    %v361 = vsel %vm338, %v325, %v353
    %v362 = vsel %vm339, %v327, %v354
    %v363 = vsel %vm340, %v330, %v355
    %v364 = vsel %vm341, %v332, %v356
    %v365 = vlaneseq
    %v366 = vand.u32 %v365, 127
    %v367 = vld [vmem:[%s12] sm:$0xff]
    %368 = vset.pattern.permute.xlu0 0
    %369 = vperm.xlu0 %368, %v367
    %v370 = vpop.permute.xlu0 %369
    %vm371 = vcmp.eq.s32.totalorder %v366, %v370
    %v372 = vsel %vm371, 1.0, 0.0
    %v373 = vld [vmem:[%s14] sm:$0xff]
    %v374 = vld [vmem:[%s14 + $0x8] sm:$0xff]
    %375 = vset.pattern.permute.xlu0 0
    %376 = vperm.xlu0 %375, %v373
    %v377 = vpop.permute.xlu0 %376
    %378 = vset.pattern.permute.xlu0 0
    %379 = vperm.xlu0 %378, %v374
    %v380 = vpop.permute.xlu0 %379
    %vm381 = vcmp.eq.s32.totalorder %v366, %v377
    %vm382 = vcmp.eq.s32.totalorder %v366, %v380
    %v383 = vsel %vm381, 1.0, 0.0
    %v384 = vsel %vm382, 1.0, 0.0
    %v385 = vlaneseq
    %v386 = vshrl.u32 %v385, 7
    %v387 = vadd.s32 %v386, 8
    %v388 = vadd.s32 %v386, 16
    %v389 = vadd.s32 %v386, 24
    %v390 = vadd.s32 %v386, 32
    %v391 = vadd.s32 %v386, 40
    %v392 = vadd.s32 %v386, 48
    %v393 = vadd.s32 %v386, 56
    %v394 = vld [vmem:[%s13] sm:$0x1]
    %v395 = vperm.slane %v394, 0
    %vm396 = vcmp.eq.s32.totalorder %v386, %v395
    %vm397 = vcmp.eq.s32.totalorder %v387, %v395
    %vm398 = vcmp.eq.s32.totalorder %v388, %v395
    %vm399 = vcmp.eq.s32.totalorder %v389, %v395
    %vm400 = vcmp.eq.s32.totalorder %v390, %v395
    %vm401 = vcmp.eq.s32.totalorder %v391, %v395
    %vm402 = vcmp.eq.s32.totalorder %v392, %v395
    %vm403 = vcmp.eq.s32.totalorder %v393, %v395
    %v404 = vsel %vm396, 1.0, 0.0
    %v405 = vsel %vm397, 1.0, 0.0
    %v406 = vsel %vm398, 1.0, 0.0
    %v407 = vsel %vm399, 1.0, 0.0
    %v408 = vsel %vm400, 1.0, 0.0
    %v409 = vsel %vm401, 1.0, 0.0
    %v410 = vsel %vm402, 1.0, 0.0
    %v411 = vsel %vm403, 1.0, 0.0
    %v412 = vld [vmem:[%s15] sm:$0xff]
    %v414 = vsel %vm173, %v372, 0
    %416 = vmatpush.msra.mxu0 0.0
    %417 = vmatpush.msra.mxu0 0.0
    %418 = vmatpush.msra.mxu0 0.0
    %419 = vmatpush.msra.mxu0 0.0
    %420 = vmatpush.msra.mxu0 0.0
    %421 = vmatpush.msra.mxu0 0.0
    %422 = vmatpush.msra.mxu0 0.0
    %423 = vmatpush.msra.mxu0 0.0
    %424 = vmatpush.msra.mxu0 %v364
    %425 = vmatpush.msra.mxu0 %v363
    %426 = vmatpush.msra.mxu0 %v362
    %427 = vmatpush.msra.mxu0 %v361
    %428 = vmatpush.msra.mxu0 %v360
    %429 = vmatpush.msra.mxu0 %v359
    %430 = vmatpush.msra.mxu0 %v358
    %431 = vmatpush.msra.mxu0 %v357
    %432 = vmatmul.f32.gmra.mxu0 %v414
    %v433 = vpop.f32.mrf.mxu0
    %v434 = vadd.f32 %v412, %v433
    %435 = vdwg.mxu0
    %436 = vst.msk [vmem:[#allocation12] sm:$0xff] %vm123, %v434
    %437 = vmatpush.msra.mxu0 0.0
    %438 = vmatpush.msra.mxu0 0.0
    %439 = vmatpush.msra.mxu0 0.0
    %440 = vmatpush.msra.mxu0 0.0
    %441 = vmatpush.msra.mxu0 0.0
    %442 = vmatpush.msra.mxu0 0.0
    %443 = vmatpush.msra.mxu0 0.0
    %444 = vmatpush.msra.mxu0 0.0
    %445 = vmatpush.msra.mxu0 %v100
    %446 = vmatpush.msra.mxu0 %v99
    %447 = vmatpush.msra.mxu0 %v98
    %448 = vmatpush.msra.mxu0 %v97
    %449 = vmatpush.msra.mxu0 %v96
    %450 = vmatpush.msra.mxu0 %v95
    %451 = vmatpush.msra.mxu0 %v94
    %452 = vmatpush.msra.mxu0 %v93
    %453 = vmatmul.f32.gmra.mxu0 %v414
    %v454 = vpop.f32.mrf.mxu0
    %v455 = vadd.f32 0.0, %v454
    %456 = vdwg.mxu0
    %v457 = vpack.c.bf16 %v455, %v455
    %v458 = vpack.c.bf16 %v358, %v357
    %v459 = vpack.c.bf16 %v360, %v359
    %v460 = vpack.c.bf16 %v362, %v361
    %v461 = vpack.c.bf16 %v364, %v363
    %v463 = vsel %vm173, %v457, 0
    %465 = vmatpush.bf16.msra.mxu0 0
    %466 = vmatpush.bf16.msra.mxu0 0
    %467 = vmatpush.bf16.msra.mxu0 0
    %468 = vmatpush.bf16.msra.mxu0 0
    %469 = vmatpush.bf16.msra.mxu0 %v461
    %470 = vmatpush.bf16.msra.mxu0 %v460
    %471 = vmatpush.bf16.msra.mxu0 %v459
    %472 = vmatpush.bf16.msra.mxu0 %v458
    %473 = vmatmul.bf16.gmra.mxu0 %v463
    %v474 = vpop.f32.mrf.mxu0
    %v475 = vadd.f32 0.0, %v474
    %v476 = vpop.f32.mrf.mxu0
    %477 = vdwg.mxu0
    %v478 = vpack.c.bf16 %v475, %v475
    %v479 = vld [vmem:[%s8] sm:$0xff]
    %v480 = vld [vmem:[%s8 + $0x8] sm:$0xff]
    %v481 = vld [vmem:[%s8 + $0x10] sm:$0xff]
    %v482 = vld [vmem:[%s8 + $0x18] sm:$0xff]
    %v483 = vpack.c.bf16 %v480, %v479
    %v484 = vpack.c.bf16 %v482, %v481
    %v486 = vsel %vm123, %v478, 0
    %488 = vmatpush.bf16.msra.mxu0 0
    %489 = vmatpush.bf16.msra.mxu0 0
    %490 = vmatpush.bf16.msra.mxu0 0
    %491 = vmatpush.bf16.msra.mxu0 0
    %492 = vmatpush.bf16.msra.mxu0 0
    %493 = vmatpush.bf16.msra.mxu0 0
    %494 = vmatpush.bf16.msra.mxu0 %v484
    %495 = vmatpush.bf16.msra.mxu0 %v483
    %496 = vmatmul.bf16.gmra.mxu0 %v486
    %v497 = vpop.f32.mrf.mxu0
    %v498 = vadd.f32 0.0, %v497
    %v499 = vpop.f32.mrf.mxu0
    %500 = vdwg.mxu0
    %v501 = vmax.f32 %v498, 0.0
    %502 = vst.msk [vmem:[#allocation10] sm:$0xff] %vm123, %v501
    %v504 = vsel %vm173, %v383, 0
    %v507 = vsel %vm173, %v384, 0
    %509 = vmatpush.msra.mxu0 0.0
    %510 = vmatpush.msra.mxu0 0.0
    %511 = vmatpush.msra.mxu0 0.0
    %512 = vmatpush.msra.mxu0 0.0
    %513 = vmatpush.msra.mxu0 0.0
    %514 = vmatpush.msra.mxu0 0.0
    %515 = vmatpush.msra.mxu0 0.0
    %516 = vmatpush.msra.mxu0 0.0
    %517 = vmatpush.msra.mxu0 %v364
    %518 = vmatpush.msra.mxu0 %v363
    %519 = vmatpush.msra.mxu0 %v362
    %520 = vmatpush.msra.mxu0 %v361
    %521 = vmatpush.msra.mxu0 %v360
    %522 = vmatpush.msra.mxu0 %v359
    %523 = vmatpush.msra.mxu0 %v358
    %524 = vmatpush.msra.mxu0 %v357
    %525 = vmatmul.f32.gmra.mxu0 %v504
    %v526 = vpop.f32.mrf.mxu0
    %v527 = vadd.f32 0.0, %v526
    %528 = vmatmul.f32.gmra.mxu0 %v507
    %v529 = vpop.f32.mrf.mxu0
    %v530 = vadd.f32 0.0, %v529
    %531 = vdwg.mxu0
    %532 = vst.msk [vmem:[#allocation9] sm:$0xff] %vm123, %v527
    %533 = vst.msk [vmem:[#allocation9 + $0x8] sm:$0xff] %vm123, %v530
    %534 = vst.msk [vmem:[#allocation9 + $0x10] sm:$0xff] %vm123, %v501
    %v535 = vld [vmem:[#allocation9] sm:$0xff]
    %v536 = vld [vmem:[#allocation9 + $0x8] sm:$0xff]
    %v537 = vld [vmem:[#allocation9 + $0x10] sm:$0xff]
    %v538 = vpack.c.bf16 %v536, %v535
    %v539 = vpack.c.bf16 %v537, %v537
    %v540 = vld [vmem:[%s9] sm:$0xff]
    %v541 = vld [vmem:[%s9 + $0x8] sm:$0xff]
    %v542 = vld [vmem:[%s9 + $0x10] sm:$0xff]
    %v543 = vld [vmem:[%s9 + $0x18] sm:$0xff]
    %v544 = vpack.c.bf16 %v541, %v540
    %v545 = vpack.c.bf16 %v543, %v542
    %v547 = vsel %vm123, %v538, 0
    %v550 = vsel %vm123, %v539, 0
    %552 = vmatpush.bf16.msra.mxu0 0
    %553 = vmatpush.bf16.msra.mxu0 0
    %554 = vmatpush.bf16.msra.mxu0 0
    %555 = vmatpush.bf16.msra.mxu0 0
    %556 = vmatpush.bf16.msra.mxu0 0
    %557 = vmatpush.bf16.msra.mxu0 0
    %558 = vmatpush.bf16.msra.mxu0 %v545
    %559 = vmatpush.bf16.msra.mxu0 %v544
    %560 = vmatmul.bf16.gmra.mxu0 %v547
    %v561 = vpop.f32.mrf.mxu0
    %v562 = vadd.f32 0.0, %v561
    %v563 = vpop.f32.mrf.mxu0
    %v564 = vadd.f32 0.0, %v563
    %565 = vmatmul.bf16.gmra.mxu0 %v550
    %v566 = vpop.f32.mrf.mxu0
    %v567 = vadd.f32 0.0, %v566
    %v568 = vpop.f32.mrf.mxu0
    %569 = vdwg.mxu0
    %v570 = vmax.f32 %v562, 0.0
    %v571 = vmax.f32 %v564, 0.0
    %v572 = vmax.f32 %v567, 0.0
    %v573 = vpack.c.bf16 %v571, %v570
    %v574 = vpack.c.bf16 %v572, %v572
    %v575 = vld [vmem:[%s10] sm:$0xff]
    %v576 = vld [vmem:[%s10 + $0x8] sm:$0xff]
    %v577 = vpack.c.bf16 %v576, %v575
    %vm578 = vcmask 130048
    %v580 = vsel %vm578, %v573, 0
    %v583 = vsel %vm578, %v574, 0
    %585 = vmatpush.bf16.msra.mxu0 0
    %586 = vmatpush.bf16.msra.mxu0 0
    %587 = vmatpush.bf16.msra.mxu0 0
    %588 = vmatpush.bf16.msra.mxu0 0
    %589 = vmatpush.bf16.msra.mxu0 0
    %590 = vmatpush.bf16.msra.mxu0 0
    %591 = vmatpush.bf16.msra.mxu0 0
    %592 = vmatpush.bf16.msra.mxu0 %v577
    %593 = vmatmul.bf16.gmra.mxu0 %v580
    %v594 = vpop.f32.mrf.mxu0
    %v595 = vadd.f32 0.0, %v594
    %v596 = vpop.f32.mrf.mxu0
    %v597 = vadd.f32 0.0, %v596
    %598 = vmatmul.bf16.gmra.mxu0 %v583
    %v599 = vpop.f32.mrf.mxu0
    %v600 = vadd.f32 0.0, %v599
    %v601 = vpop.f32.mrf.mxu0
    %602 = vdwg.mxu0
    %v603 = vmax.f32 %v595, 0.0
    %v604 = vmax.f32 %v597, 0.0
    %v605 = vmax.f32 %v600, 0.0
    %v606 = vpack.c.bf16 %v604, %v603
    %v607 = vpack.c.bf16 %v605, %v605
    %v608 = vld [vmem:[%s11] sm:$0xff]
    %v609 = vpack.c.bf16 %v608, %v608
    %vm610 = vcmask 64512
    %v612 = vsel %vm610, %v606, 0
    %v615 = vsel %vm610, %v607, 0
    %vm617 = vcmask 1043456
    %v619 = vsel %vm617, %v609, 0
    %621 = vmatpush.bf16.msra.mxu0 0
    %622 = vmatpush.bf16.msra.mxu0 0
    %623 = vmatpush.bf16.msra.mxu0 0
    %624 = vmatpush.bf16.msra.mxu0 0
    %625 = vmatpush.bf16.msra.mxu0 0
    %626 = vmatpush.bf16.msra.mxu0 0
    %627 = vmatpush.bf16.msra.mxu0 0
    %628 = vmatpush.bf16.msra.mxu0 %v619
    %629 = vmatmul.bf16.gmra.mxu0 %v612
    %v630 = vpop.f32.mrf.mxu0
    %v631 = vadd.f32 0.0, %v630
    %v632 = vpop.f32.mrf.mxu0
    %v633 = vadd.f32 0.0, %v632
    %634 = vmatmul.bf16.gmra.mxu0 %v615
    %v635 = vpop.f32.mrf.mxu0
    %v636 = vadd.f32 0.0, %v635
    %v637 = vpop.f32.mrf.mxu0
    %638 = vdwg.mxu0
    %vm639 = vcmask 7168
    %640 = vst.msk [vmem:[%s18] sm:$0xff] %vm639, %v631
    %641 = vst.msk [vmem:[%s18 + $0x8] sm:$0xff] %vm639, %v633
    %642 = vst.msk [vmem:[%s18 + $0x10] sm:$0xff] %vm639, %v636
    %v644 = vsel %vm610, %v404, 0
    %v647 = vsel %vm610, %v405, 0
    %v650 = vsel %vm610, %v406, 0
    %v653 = vsel %vm610, %v407, 0
    %v656 = vsel %vm610, %v408, 0
    %v659 = vsel %vm610, %v409, 0
    %v662 = vsel %vm610, %v410, 0
    %v665 = vsel %vm610, %v411, 0
    %667 = vmatpush.msra.mxu0 0.0
    %668 = vmatpush.msra.mxu0 0.0
    %669 = vmatpush.msra.mxu0 0.0
    %670 = vmatpush.msra.mxu0 0.0
    %671 = vmatpush.msra.mxu0 0.0
    %672 = vmatpush.msra.mxu0 0.0
    %673 = vmatpush.msra.mxu0 0.0
    %674 = vmatpush.msra.mxu0 0.0
    %675 = vmatpush.msra.mxu0 0.0
    %676 = vmatpush.msra.mxu0 0.0
    %677 = vmatpush.msra.mxu0 0.0
    %678 = vmatpush.msra.mxu0 0.0
    %679 = vmatpush.msra.mxu0 0.0
    %680 = vmatpush.msra.mxu0 0.0
    %681 = vmatpush.msra.mxu0 0.0
    %682 = vmatpush.msra.mxu0 %v501
    %683 = vmatmul.f32.gmra.mxu0 %v644
    %v684 = vpop.f32.mrf.mxu0
    %v685 = vadd.f32 0.0, %v684
    %686 = vmatmul.f32.gmra.mxu0 %v647
    %v687 = vpop.f32.mrf.mxu0
    %v688 = vadd.f32 0.0, %v687
    %689 = vmatmul.f32.gmra.mxu0 %v650
    %v690 = vpop.f32.mrf.mxu0
    %v691 = vadd.f32 0.0, %v690
    %692 = vmatmul.f32.gmra.mxu0 %v653
    %v693 = vpop.f32.mrf.mxu0
    %v694 = vadd.f32 0.0, %v693
    %695 = vmatmul.f32.gmra.mxu0 %v656
    %v696 = vpop.f32.mrf.mxu0
    %v697 = vadd.f32 0.0, %v696
    %698 = vmatmul.f32.gmra.mxu0 %v659
    %v699 = vpop.f32.mrf.mxu0
    %v700 = vadd.f32 0.0, %v699
    %701 = vmatmul.f32.gmra.mxu0 %v662
    %v702 = vpop.f32.mrf.mxu0
    %v703 = vadd.f32 0.0, %v702
    %704 = vmatmul.f32.gmra.mxu0 %v665
    %v705 = vpop.f32.mrf.mxu0
    %v706 = vadd.f32 0.0, %v705
    %707 = vdwg.mxu0
    %v708 = vsel %vm610, %v404, 0.0
    %709 = vadd.xlane.f32.xlu0 %v708
    %v710 = vpop.xlane.xlu0 %709
    %v711 = vsel %vm610, %v405, 0.0
    %712 = vadd.xlane.f32.xlu0 %v711
    %v713 = vpop.xlane.xlu0 %712
    %v714 = vsel %vm610, %v406, 0.0
    %715 = vadd.xlane.f32.xlu0 %v714
    %v716 = vpop.xlane.xlu0 %715
    %v717 = vsel %vm610, %v407, 0.0
    %718 = vadd.xlane.f32.xlu0 %v717
    %v719 = vpop.xlane.xlu0 %718
    %v720 = vsel %vm610, %v408, 0.0
    %721 = vadd.xlane.f32.xlu0 %v720
    %v722 = vpop.xlane.xlu0 %721
    %v723 = vsel %vm610, %v409, 0.0
    %724 = vadd.xlane.f32.xlu0 %v723
    %v725 = vpop.xlane.xlu0 %724
    %v726 = vsel %vm610, %v410, 0.0
    %727 = vadd.xlane.f32.xlu0 %v726
    %v728 = vpop.xlane.xlu0 %727
    %v729 = vsel %vm610, %v411, 0.0
    %730 = vadd.xlane.f32.xlu0 %v729
    %v731 = vpop.xlane.xlu0 %730
    %v732 = vsub.f32 1.0, %v710
    %v733 = vsub.f32 1.0, %v713
    %v734 = vsub.f32 1.0, %v716
    %v735 = vsub.f32 1.0, %v719
    %v736 = vsub.f32 1.0, %v722
    %v737 = vsub.f32 1.0, %v725
    %v738 = vsub.f32 1.0, %v728
    %v739 = vsub.f32 1.0, %v731
    %v740 = vmul.f32 %v357, %v732
    %v741 = vmul.f32 %v358, %v733
    %v742 = vmul.f32 %v359, %v734
    %v743 = vmul.f32 %v360, %v735
    %v744 = vmul.f32 %v361, %v736
    %v745 = vmul.f32 %v362, %v737
    %v746 = vmul.f32 %v363, %v738
    %v747 = vmul.f32 %v364, %v739
    %v748 = vadd.f32 %v740, %v685
    %v749 = vadd.f32 %v741, %v688
    %v750 = vadd.f32 %v742, %v691
    %v751 = vadd.f32 %v743, %v694
    %v752 = vadd.f32 %v744, %v697
    %v753 = vadd.f32 %v745, %v700
    %v754 = vadd.f32 %v746, %v703
    %v755 = vadd.f32 %v747, %v706
    %756 = vst.msk [vmem:[%s16] sm:$0xff] %vm123, %v748
    %757 = vst.msk [vmem:[%s16 + $0x8] sm:$0xff] %vm123, %v749
    %758 = vst.msk [vmem:[%s16 + $0x10] sm:$0xff] %vm123, %v750
    %759 = vst.msk [vmem:[%s16 + $0x18] sm:$0xff] %vm123, %v751
    %760 = vst.msk [vmem:[%s16 + $0x20] sm:$0xff] %vm123, %v752
    %761 = vst.msk [vmem:[%s16 + $0x28] sm:$0xff] %vm123, %v753
    %762 = vst.msk [vmem:[%s16 + $0x30] sm:$0xff] %vm123, %v754
    %763 = vst.msk [vmem:[%s16 + $0x38] sm:$0xff] %vm123, %v755
    // Predicated region
    $region74: #{ggad_forward.1} parent=1 // pred_check
      _
    $region75: #{ggad_forward.1} parent=1 // pred_check_branch
      %765 = sbr.rel (0) target = $region77
    $region76: #{ggad_forward.1} parent=1 // pred_region
      _
    $region77: #{ggad_forward.1} parent=1 // pred_fallthru
      _
    // Predicated region
    $region78: #{ggad_forward.1} parent=1 // pred_check
      _
    $region79: #{ggad_forward.1} parent=1 // pred_check_branch
      %767 = sbr.rel (0) target = $region81
    $region80: #{ggad_forward.1} parent=1 // pred_region
      %769 = vsyncadd [#allocation6], 0
      %s770 = sshll.u32 [#allocation9], 4
      %s771 = int_to_ptr.vmem [resolvable:$true] %s770
      %s772 = sshll.u32 %s17, 4
      %s773 = int_to_ptr.hbm [resolvable:$true] %s772
      %778 = dma.vmem_to_hbm [thread:$0]  %s771, 384, %s773, [#allocation6], 128, 128, 8
    $region81: #{ggad_forward.1} parent=1 // pred_fallthru
      _
    // Predicated region
    $region82: #{ggad_forward.1} parent=1 // pred_check
      _
    $region83: #{ggad_forward.1} parent=1 // pred_check_branch
      %780 = sbr.rel (0) target = $region85
    $region84: #{ggad_forward.1} parent=1 // pred_region
      _
    $region85: #{ggad_forward.1} parent=1 // pred_fallthru
      _
    // Predicated region
    $region86: #{ggad_forward.1} parent=1 // pred_check
      _
    $region87: #{ggad_forward.1} parent=1 // pred_check_branch
      %782 = sbr.rel (0) target = $region89
    $region88: #{ggad_forward.1} parent=1 // pred_region
      %784 = vsyncadd [#allocation11], 0
      %s786 = sshll.u32 [#allocation10], 4
      %s787 = int_to_ptr.vmem [resolvable:$true] %s786
      %s788 = sshll.u32 %s19, 4
      %s789 = int_to_ptr.hbm [resolvable:$true] %s788
      %791 = dma.vmem_to_hbm [thread:$0]  %s787, 128, %s789, [#allocation11]
    $region89: #{ggad_forward.1} parent=1 // pred_fallthru
      _
    // Predicated region
    $region90: #{ggad_forward.1} parent=1 // pred_check
      _
    $region91: #{ggad_forward.1} parent=1 // pred_check_branch
      %793 = sbr.rel (0) target = $region93
    $region92: #{ggad_forward.1} parent=1 // pred_region
      %795 = vsyncadd [#allocation11], 0
      %s797 = sshll.u32 [#allocation12], 4
      %s798 = int_to_ptr.vmem [resolvable:$true] %s797
      %s799 = sshll.u32 %s20, 4
      %s800 = int_to_ptr.hbm [resolvable:$true] %s799
      %802 = dma.vmem_to_hbm [thread:$0]  %s798, 128, %s800, [#allocation11]
    $region93: #{ggad_forward.1} parent=1 // pred_fallthru
      _
    // Predicated region
    $region94: #{ggad_forward.1} parent=1 // pred_check
      _
    $region95: #{ggad_forward.1} parent=1 // pred_check_branch
      %804 = sbr.rel (0) target = $region97
    $region96: #{ggad_forward.1} parent=1 // pred_region
      _
    $region97: #{ggad_forward.1} parent=1 // pred_fallthru
      _
    // Predicated region
    $region98: #{ggad_forward.1} parent=1 // pred_check
      _
    $region99: #{ggad_forward.1} parent=1 // pred_check_branch
      %806 = sbr.rel (0) target = $region101
    $region100: #{ggad_forward.1} parent=1 // pred_region
      %808 = dma.done [#allocation6], 384
    $region101: #{ggad_forward.1} parent=1 // pred_fallthru
      _
    // Predicated region
    $region102: #{ggad_forward.1} parent=1 // pred_check
      _
    $region103: #{ggad_forward.1} parent=1 // pred_check_branch
      %810 = sbr.rel (0) target = $region105
    $region104: #{ggad_forward.1} parent=1 // pred_region
      _
    $region105: #{ggad_forward.1} parent=1 // pred_fallthru
      _
    // Predicated region
    $region106: #{ggad_forward.1} parent=1 // pred_check
      _
    $region107: #{ggad_forward.1} parent=1 // pred_check_branch
      %812 = sbr.rel (0) target = $region109
    $region108: #{ggad_forward.1} parent=1 // pred_region
      %814 = dma.done [#allocation11], 128
    $region109: #{ggad_forward.1} parent=1 // pred_fallthru
      _
    // Predicated region
    $region110: #{ggad_forward.1} parent=1 // pred_check
      _
    $region111: #{ggad_forward.1} parent=1 // pred_check_branch
      %816 = sbr.rel (0) target = $region113
    $region112: #{ggad_forward.1} parent=1 // pred_region
      %818 = dma.done [#allocation11], 128
    $region113: #{ggad_forward.1} parent=1 // pred_fallthru
      _
    %819 = vsyncpa [#allocation5], 1
    %820 = vsyncpa [#allocation8], 1
    %821 = vsyncpa [#allocation6], 1
    %822 = vsyncpa [#allocation11], 1

</llo_original>
